<compile_context>
chip_gen: v7x
topology: tpu7x:2x2x1
jax: 0.10.0
libtpu: 0.0.40
codegen_flags: <defaults>
</compile_context>

<pallas_src>
import jax
import jax.numpy as jnp
from jax.experimental import pallas as pl
from jax.experimental.pallas import tpu as pltpu


def _round_up(x, m):
    return (x + m - 1) // m * m


def _make_kernel(b_tile, n_br, s_pad, branch_scale):
    """Fused conv(+bias)+ReLU+maxpool+branch-add+linear over one batch tile."""

    def kernel(xw_ref, wk_ref, wl_ref, bl_ref, out_ref):
        # xw_ref : (1, M, K_pad)   M = n_br * b_tile * s_pad, branch-major rows
        # wk_ref : (K_pad, F_PAD)  block-diagonal conv weights (+ bias rows)
        # wl_ref : (F_PAD, C_PAD)  head weight
        # bl_ref : (1, C_PAD)      head bias (f32)
        # out_ref: (1, b_tile, C_PAD)
        x = xw_ref[0]
        acc = jnp.dot(x, wk_ref[...], preferred_element_type=jnp.float32)
        acc = jnp.maximum(acc, 0.0)          # conv bias folded via ones column
        F = acc.shape[-1]
        half = b_tile * s_pad                # 8-aligned branch boundary
        feat = jnp.max(acc[:half].reshape(b_tile, s_pad, F), axis=1)
        if n_br == 2:
            feat = feat + jnp.max(acc[half:].reshape(b_tile, s_pad, F), axis=1)
        if branch_scale != 1.0:
            feat = feat * branch_scale       # tied-table shortcut: x1 == x2
        # dropout is identity at inference
        # TODO(synk): training-mode stochastic dropout not implemented
        out = bl_ref[...] + jnp.dot(feat.astype(wl_ref.dtype), wl_ref[...],
                                    preferred_element_type=jnp.float32)
        out_ref[0] = out.astype(out_ref.dtype)

    return kernel


def make_sentence_cnn_forward(emb1, emb2, conv_ws, conv_bs, wl, bl,
                              filter_lengths, filter_counts, nb_classes,
                              seq_len, *, compute_dtype=jnp.float32,
                              target_rows=256):
    """Packs parameters ONCE (hoisted out of the forward) and returns a jitted
    forward(input_ids).  target_rows ~ MXU rows per grid step (128 on v5e,
    256 on v6e/v7x)."""
    D = emb1.shape[1]
    S = seq_len
    total_filters = sum(filter_counts)
    F_PAD = _round_up(max(total_filters, 1), 128)
    C_PAD = _round_up(max(nb_classes, 1), 128)

    s_outs = [S - f + 1 for f in filter_lengths]
    s_pad = _round_up(max(s_outs), 8)

    # --- block-diagonal conv weight: bank i uses K rows [koff, koff+f*D] ---
    # (last row = bias, hit by the ones column) and F columns [foff, foff+n).
    k_raw = sum(f * D + 1 for f in filter_lengths)
    K_pad = _round_up(k_raw, 128)
    wk = jnp.zeros((K_pad, F_PAD), jnp.float32)
    koff = foff = 0
    bank_offsets = []
    for f, n, w, b in zip(filter_lengths, filter_counts, conv_ws, conv_bs):
        kd = f * D
        wk = wk.at[koff:koff + kd, foff:foff + n].set(
            w.reshape(kd, n).astype(jnp.float32))
        wk = wk.at[koff + kd, foff:foff + n].set(b.reshape(n).astype(jnp.float32))
        bank_offsets.append(koff)
        koff += kd + 1
        foff += n

    wl_pad = jnp.zeros((F_PAD, C_PAD), jnp.float32)
    wl_pad = wl_pad.at[:total_filters, :nb_classes].set(wl.astype(jnp.float32))
    bl_pad = jnp.zeros((1, C_PAD), jnp.float32)
    bl_pad = bl_pad.at[0, :nb_classes].set(bl.reshape(-1).astype(jnp.float32))

    wk = wk.astype(compute_dtype)          # MXU operands (f32 or bf16)
    wl_pad = wl_pad.astype(compute_dtype)  # head bias stays f32

    # Tied-table shortcut (the module copies the same numpy table into both
    # nn.Embedding layers): run one branch, scale pooled features by 2.
    shared = emb1 is emb2
    n_br = 1 if shared else 2
    branch_scale = 2.0 if shared else 1.0
    emb1 = emb1.astype(jnp.float32)
    emb2 = emb1 if shared else emb2.astype(jnp.float32)

    rows_per_elem = n_br * s_pad

    def im2row(x, batch):
        # x: (batch, S, D) -> (batch, s_pad, K_pad); bias folded via ones column.
        # TODO(synk): for long sequences, build the f shifted windows in-kernel
        # instead of materializing im2row (~mean(f)x less HBM traffic at big S).
        cols = []
        for f, s_out in zip(filter_lengths, s_outs):
            win = jnp.concatenate([x[:, j:j + s_out, :] for j in range(f)],
                                  axis=-1)                       # (B, s_out, f*D)
            ones = jnp.ones((batch, s_out, 1), jnp.float32)      # bias column
            win = jnp.concatenate([win, ones], axis=-1)
            win = jnp.pad(win, ((0, 0), (0, s_pad - s_out), (0, 0)))
            cols.append(win)
        xw = jnp.concatenate(cols, axis=-1)                      # (B, s_pad, k_raw)
        return jnp.pad(xw, ((0, 0), (0, 0), (0, K_pad - k_raw)))

    @jax.jit
    def forward(input_ids):
        B = input_ids.shape[0]
        b_tile = max(1, min(B, max(1, target_rows // rows_per_elem)))
        n_tiles = pl.cdiv(B, b_tile)
        B_pad = n_tiles * b_tile
        M = rows_per_elem * b_tile

        branches = []
        for emb in ((emb1,) if shared else (emb1, emb2)):
            x = jnp.take(emb, input_ids, axis=0)   # nn.Embedding forward = gather
            xw = im2row(x, B)                      # (B, s_pad, K_pad)
            xw = jnp.pad(xw, ((0, B_pad - B), (0, 0), (0, 0)))
            branches.append(xw.reshape(n_tiles, b_tile, s_pad, K_pad))
        # branch-major rows inside each batch tile: (tile, branch, elem, s, K)
        xw = jnp.stack(branches, axis=1).reshape(n_tiles, M, K_pad)
        xw = xw.astype(compute_dtype)

        kernel = _make_kernel(b_tile, n_br, s_pad, branch_scale)
        out = pl.pallas_call(
            kernel,
            out_shape=jax.ShapeDtypeStruct((n_tiles, b_tile, C_PAD), jnp.float32),
            grid_spec=pltpu.PrefetchScalarGridSpec(
                num_scalar_prefetch=0,
                grid=(n_tiles,),
                in_specs=[
                    pl.BlockSpec((1, M, K_pad), lambda t: (t, 0, 0)),
                    pl.BlockSpec((K_pad, F_PAD), lambda t: (0, 0)),
                    pl.BlockSpec((F_PAD, C_PAD), lambda t: (0, 0)),
                    pl.BlockSpec((1, C_PAD), lambda t: (0, 0)),
                ],
                out_specs=pl.BlockSpec((1, b_tile, C_PAD), lambda t: (t, 0, 0)),
            ),
            compiler_params=pltpu.CompilerParams(
                dimension_semantics=("parallel",)),
        )(xw, wk, wl_pad, bl_pad)

        return out.reshape(B_pad, C_PAD)[:B, :nb_classes]

    return forward


def reference_forward(input_ids, emb1, emb2, conv_ws, conv_bs, wl, bl,
                      filter_lengths, filter_counts):
    """Pure-JAX reference mirroring the PyTorch forward (eval mode)."""
    def conv_features(x):
        feats = []
        for f, w, b in zip(filter_lengths, conv_ws, conv_bs):
            s_out = x.shape[1] - f + 1
            windows = jnp.stack([x[:, j:j + s_out, :] for j in range(f)], axis=2)
            out = jnp.einsum('bsfd,fdn->bsn', windows, w) + b[0]
            out = jnp.maximum(out, 0.0)
            feats.append(jnp.max(out, axis=1))
        return jnp.concatenate(feats, axis=1)

    x1 = jnp.take(emb1, input_ids, axis=0)
    x2 = jnp.take(emb2, input_ids, axis=0)
    x = conv_features(x1) + conv_features(x2)
    return jnp.dot(x, wl) + bl[0]


if __name__ == "__main__":
    key = jax.random.PRNGKey(0)
    B, S, D = 2, 16, 32
    vocab_size = 50
    nb_classes = 4
    filter_lengths = (2, 3, 4)
    filter_counts = (8, 8, 16)

    keys = jax.random.split(key, 10)

    # word_embedding_numpy (shared by both embedding tables, as in the module)
    word_embedding = jax.random.normal(keys[0], (vocab_size, D), jnp.float32) * 0.1
    emb_tied = word_embedding

    # Conv2d(1, n, (f, D)) weights: torch (n, 1, f, D) -> kernel layout (f, D, n)
    # kaiming_normal_(mode='fan_out', nonlinearity='relu'): std = sqrt(2/(n*f*D))
    conv_ws, conv_bs = [], []
    for i, (f, n) in enumerate(zip(filter_lengths, filter_counts)):
        std = (2.0 / (n * f * D)) ** 0.5
        conv_ws.append(jax.random.normal(keys[1 + i], (f, D, n), jnp.float32) * std)
        conv_bs.append(jnp.zeros((1, n), jnp.float32))

    total_filters = sum(filter_counts)
    std_l = (2.0 / nb_classes) ** 0.5
    wl = jax.random.normal(keys[5], (total_filters, nb_classes), jnp.float32) * std_l
    bl = jnp.zeros((1, nb_classes), jnp.float32)

    input_ids = jax.random.randint(keys[6], (B, S), 0, vocab_size, dtype=jnp.int32)

    # --- test 1: module as specified (tied tables, zero biases), f32, 1e-4 ---
    fwd = make_sentence_cnn_forward(emb_tied, emb_tied, conv_ws, conv_bs, wl, bl,
                                    filter_lengths, filter_counts, nb_classes, S)
    logits = jax.block_until_ready(fwd(input_ids))
    ref = reference_forward(input_ids, emb_tied, emb_tied, conv_ws, conv_bs, wl, bl,
                            filter_lengths, filter_counts)
    assert logits.shape == (B, nb_classes)
    assert jnp.allclose(logits, ref, atol=1e-4, rtol=1e-4), (logits, ref)

    # --- test 2: untied second table + nonzero biases (exercises the
    #             dual-branch path and the folded bias rows), f32, 1e-4 ---
    emb2 = word_embedding + 0.05 * jax.random.normal(keys[7], (vocab_size, D),
                                                     jnp.float32)
    conv_bs2 = [0.1 * jax.random.normal(keys[8], (1, n), jnp.float32)
                for n in filter_counts]
    bl2 = 0.1 * jax.random.normal(keys[9], (1, nb_classes), jnp.float32)
    fwd2 = make_sentence_cnn_forward(emb_tied, emb2, conv_ws, conv_bs2, wl, bl2,
                                     filter_lengths, filter_counts, nb_classes, S)
    logits2 = jax.block_until_ready(fwd2(input_ids))
    ref2 = reference_forward(input_ids, emb_tied, emb2, conv_ws, conv_bs2, wl, bl2,
                             filter_lengths, filter_counts)
    assert jnp.allclose(logits2, ref2, atol=1e-4, rtol=1e-4), (logits2, ref2)

    # --- test 3: bf16 MXU operands (v6e/v7x native path), f32 accumulation ---
    fwd_bf16 = make_sentence_cnn_forward(emb_tied, emb2, conv_ws, conv_bs2, wl, bl2,
                                         filter_lengths, filter_counts, nb_classes,
                                         S, compute_dtype=jnp.bfloat16)
    logits3 = jax.block_until_ready(fwd_bf16(input_ids))
    assert jnp.allclose(logits3, ref2, atol=5e-2, rtol=5e-2), (logits3, ref2)

    print("KERNEL_OK")
</pallas_src>

<mosaic_0001>
module attributes {stable_mosaic.version = 11 : i64} {
  func.func @kernel(%arg0: i32, %arg1: memref<1x32x384xf32, #tpu.memory_space<vmem>>, %arg2: memref<384x128xf32, #tpu.memory_space<vmem>>, %arg3: memref<128x128xf32, #tpu.memory_space<vmem>>, %arg4: memref<1x128xf32, #tpu.memory_space<vmem>>, %arg5: memref<1x2x128xf32, #tpu.memory_space<vmem>>) attributes {dimension_semantics = [#tpu.dimension_semantics<parallel>], iteration_bounds = array<i64: 1>, scalar_prefetch = 0 : i64, scratch_operands = 0 : i64, tpu.core_type = #tpu.core_type<tc>, window_params = [{transform_indices = @transform_0, window_bounds = array<i64: 1, 32, 384>}, {pipeline_mode = #tpu.pipeline_mode<synchronous>, transform_indices = @transform_1, window_bounds = array<i64: 384, 128>}, {pipeline_mode = #tpu.pipeline_mode<synchronous>, transform_indices = @transform_2, window_bounds = array<i64: 128, 128>}, {pipeline_mode = #tpu.pipeline_mode<synchronous>, transform_indices = @transform_3, window_bounds = array<i64: 1, 128>}, {transform_indices = @transform_4, window_bounds = array<i64: 1, 2, 128>}]} {
    %c0 = arith.constant 0 : index
    %c0_0 = arith.constant 0 : index
    %c0_1 = arith.constant 0 : index
    %0 = vector.load %arg1[%c0, %c0_0, %c0_1] : memref<1x32x384xf32, #tpu.memory_space<vmem>>, vector<1x32x384xf32>
    %1 = vector.shape_cast %0 : vector<1x32x384xf32> to vector<32x384xf32>
    %c0_2 = arith.constant 0 : index
    %c0_3 = arith.constant 0 : index
    %2 = vector.load %arg2[%c0_2, %c0_3] : memref<384x128xf32, #tpu.memory_space<vmem>>, vector<384x128xf32>
    %cst = arith.constant dense<0.000000e+00> : vector<32x128xf32>
    %3 = tpu.matmul %1, %2, %cst {dimension_numbers = #tpu.dot_dimension_numbers<[1], [0], [0], [1], [0, 0, 1, 1], [], []>} : vector<32x384xf32>, vector<384x128xf32>, vector<32x128xf32> -> vector<32x128xf32>
    %cst_4 = arith.constant 0.000000e+00 : f32
    %4 = vector.broadcast %cst_4 : f32 to vector<32x128xf32>
    %5 = arith.maximumf %3, %4 : vector<32x128xf32>
    %6 = vector.shape_cast %5 : vector<32x128xf32> to vector<2x16x128xf32>
    %cst_5 = arith.constant dense<0xFF800000> : vector<2x128xf32>
    %7 = vector.multi_reduction <maximumf>, %6, %cst_5 [1] : vector<2x16x128xf32> to vector<2x128xf32>
    %cst_6 = arith.constant 2.000000e+00 : f32
    %8 = vector.broadcast %cst_6 : f32 to vector<2x128xf32>
    %9 = arith.mulf %7, %8 : vector<2x128xf32>
    %c0_7 = arith.constant 0 : index
    %c0_8 = arith.constant 0 : index
    %10 = vector.load %arg4[%c0_7, %c0_8] : memref<1x128xf32, #tpu.memory_space<vmem>>, vector<1x128xf32>
    %c0_9 = arith.constant 0 : index
    %c0_10 = arith.constant 0 : index
    %11 = vector.load %arg3[%c0_9, %c0_10] : memref<128x128xf32, #tpu.memory_space<vmem>>, vector<128x128xf32>
    %cst_11 = arith.constant dense<0.000000e+00> : vector<2x128xf32>
    %12 = tpu.matmul %9, %11, %cst_11 {dimension_numbers = #tpu.dot_dimension_numbers<[1], [0], [0], [1], [0, 0, 1, 1], [], []>} : vector<2x128xf32>, vector<128x128xf32>, vector<2x128xf32> -> vector<2x128xf32>
    %13 = vector.broadcast %10 : vector<1x128xf32> to vector<2x128xf32>
    %14 = arith.addf %13, %12 : vector<2x128xf32>
    %c0_12 = arith.constant 0 : index
    %c0_13 = arith.constant 0 : index
    %c0_14 = arith.constant 0 : index
    %15 = vector.load %arg5[%c0_12, %c0_13, %c0_14] : memref<1x2x128xf32, #tpu.memory_space<vmem>>, vector<1x2x128xf32>
    %16 = vector.shape_cast %15 : vector<1x2x128xf32> to vector<2x128xf32>
    %17 = vector.shape_cast %14 : vector<2x128xf32> to vector<1x2x128xf32>
    tpu.vector_store %arg5[%c0_12, %c0_13, %c0_14], %17 {strides = array<i32>} : memref<1x2x128xf32, #tpu.memory_space<vmem>>, vector<1x2x128xf32>,
    return
  }
  func.func @transform_0(%arg0: i32) -> (i32, i32, i32) {
    %c0_i32 = arith.constant 0 : i32
    %c0_i32_0 = arith.constant 0 : i32
    %c0_i32_1 = arith.constant 0 : i32
    return %arg0, %c0_i32, %c0_i32_0 : i32, i32, i32
  }
  func.func @transform_1(%arg0: i32) -> (i32, i32) {
    %c0_i32 = arith.constant 0 : i32
    %c0_i32_0 = arith.constant 0 : i32
    %c0_i32_1 = arith.constant 0 : i32
    return %c0_i32, %c0_i32_0 : i32, i32
  }
  func.func @transform_2(%arg0: i32) -> (i32, i32) {
    %c0_i32 = arith.constant 0 : i32
    %c0_i32_0 = arith.constant 0 : i32
    %c0_i32_1 = arith.constant 0 : i32
    return %c0_i32, %c0_i32_0 : i32, i32
  }
  func.func @transform_3(%arg0: i32) -> (i32, i32) {
    %c0_i32 = arith.constant 0 : i32
    %c0_i32_0 = arith.constant 0 : i32
    %c0_i32_1 = arith.constant 0 : i32
    return %c0_i32, %c0_i32_0 : i32, i32
  }
  func.func @transform_4(%arg0: i32) -> (i32, i32, i32) {
    %c0_i32 = arith.constant 0 : i32
    %c0_i32_0 = arith.constant 0 : i32
    %c0_i32_1 = arith.constant 0 : i32
    return %arg0, %c0_i32, %c0_i32_0 : i32, i32, i32
  }
}

</mosaic_0001>

<llo_original>
// kernel: forward.1
$region0: #{forward.1}
  #allocation0 [shape = 'u32[]', space=smem, size = 0x4, offset = 0x4, fixed_abs, tag = 'smem constant byte address 0x4 - core index']
  #allocation1 [shape = 'u32[144,128]{1,0:T(1,128)}', space=vmem, size = 0x12000, scoped, tag = 'internal scratch']
  %s0 = inlined_call_operand.vmem [shape: f32[1,32,384], index: 0, kind: input, shape index: {}]
  %s1 = inlined_call_operand.vmem [shape: f32[384,128], index: 1, kind: input, shape index: {}]
  %s2 = inlined_call_operand.vmem [shape: f32[128,128], index: 2, kind: input, shape index: {}]
  %s3 = inlined_call_operand.vmem [shape: f32[1,128], index: 3, kind: input, shape index: {}]
  %s4 = inlined_call_operand.hbm [shape: f32[1,2,128], index: 4, kind: output, shape index: {}]
  %s5 = sld [smem:[#allocation0]]
  $region26: #{forward.1} parent=0
    _
  %s7 = ssub.s32 1, %s5
  %s8 = scalar_select 0, %s7, %s5
  $region1: #{forward.1} parent=0
    #allocation2 [shape = 'u8[1024]{0}', space=vmem, size = 0x400, scoped, tag = 'output window, operand 0, single buffered']
    #allocation3 [shape = 's32[1]{0}', space=sflag, size = 0x4, scoped, tag = 'scoped memory for forward.1']
    %9 = vsyncpa [#allocation3], 0
    // Predicated region
    $region2: #{forward.1} parent=1 // pred_check
      _
    $region3: #{forward.1} parent=1 // pred_check_branch
      %11 = sbr.rel (0) target = $region5
    $region4: #{forward.1} parent=1 // pred_region
      _
    $region5: #{forward.1} parent=1 // pred_fallthru
      _
    // Predicated region
    $region6: #{forward.1} parent=1 // pred_check
      _
    $region7: #{forward.1} parent=1 // pred_check_branch
      %13 = sbr.rel (0) target = $region9
    $region8: #{forward.1} parent=1 // pred_region
      _
    $region9: #{forward.1} parent=1 // pred_fallthru
      _
    // Predicated region
    $region10: #{forward.1} parent=1 // pred_check
      _
    $region11: #{forward.1} parent=1 // pred_check_branch
      %15 = sbr.rel (0) target = $region13
    $region12: #{forward.1} parent=1 // pred_region
      _
    $region13: #{forward.1} parent=1 // pred_fallthru
      _
    // Predicated region
    $region14: #{forward.1} parent=1 // pred_check
      _
    $region15: #{forward.1} parent=1 // pred_check_branch
      %17 = sbr.rel (0) target = $region17
    $region16: #{forward.1} parent=1 // pred_region
      _
    $region17: #{forward.1} parent=1 // pred_fallthru
      _
    %v18 = vld [vmem:[%s0] sm:$0xff]
    %v19 = vld [vmem:[%s0 + $0x8] sm:$0xff]
    %v20 = vld [vmem:[%s0 + $0x10] sm:$0xff]
    %v21 = vld [vmem:[%s0 + $0x18] sm:$0xff]
    %v22 = vld [vmem:[%s0 + $0x20] sm:$0xff]
    %v23 = vld [vmem:[%s0 + $0x28] sm:$0xff]
    %v24 = vld [vmem:[%s0 + $0x30] sm:$0xff]
    %v25 = vld [vmem:[%s0 + $0x38] sm:$0xff]
    %v26 = vld [vmem:[%s0 + $0x40] sm:$0xff]
    %v27 = vld [vmem:[%s0 + $0x48] sm:$0xff]
    %v28 = vld [vmem:[%s0 + $0x50] sm:$0xff]
    %v29 = vld [vmem:[%s0 + $0x58] sm:$0xff]
    %v30 = vld [vmem:[%s1] sm:$0xff]
    %v31 = vld [vmem:[%s1 + $0x8] sm:$0xff]
    %v32 = vld [vmem:[%s1 + $0x10] sm:$0xff]
    %v33 = vld [vmem:[%s1 + $0x18] sm:$0xff]
    %v34 = vld [vmem:[%s1 + $0x20] sm:$0xff]
    %v35 = vld [vmem:[%s1 + $0x28] sm:$0xff]
    %v36 = vld [vmem:[%s1 + $0x30] sm:$0xff]
    %v37 = vld [vmem:[%s1 + $0x38] sm:$0xff]
    %v38 = vld [vmem:[%s1 + $0x40] sm:$0xff]
    %v39 = vld [vmem:[%s1 + $0x48] sm:$0xff]
    %v40 = vld [vmem:[%s1 + $0x50] sm:$0xff]
    %v41 = vld [vmem:[%s1 + $0x58] sm:$0xff]
    %v42 = vld [vmem:[%s1 + $0x60] sm:$0xff]
    %v43 = vld [vmem:[%s1 + $0x68] sm:$0xff]
    %v44 = vld [vmem:[%s1 + $0x70] sm:$0xff]
    %v45 = vld [vmem:[%s1 + $0x78] sm:$0xff]
    %v46 = vld [vmem:[%s1 + $0x80] sm:$0xff]
    %v47 = vld [vmem:[%s1 + $0x88] sm:$0xff]
    %v48 = vld [vmem:[%s1 + $0x90] sm:$0xff]
    %v49 = vld [vmem:[%s1 + $0x98] sm:$0xff]
    %v50 = vld [vmem:[%s1 + $0xa0] sm:$0xff]
    %v51 = vld [vmem:[%s1 + $0xa8] sm:$0xff]
    %v52 = vld [vmem:[%s1 + $0xb0] sm:$0xff]
    %v53 = vld [vmem:[%s1 + $0xb8] sm:$0xff]
    %v54 = vld [vmem:[%s1 + $0xc0] sm:$0xff]
    %v55 = vld [vmem:[%s1 + $0xc8] sm:$0xff]
    %v56 = vld [vmem:[%s1 + $0xd0] sm:$0xff]
    %v57 = vld [vmem:[%s1 + $0xd8] sm:$0xff]
    %v58 = vld [vmem:[%s1 + $0xe0] sm:$0xff]
    %v59 = vld [vmem:[%s1 + $0xe8] sm:$0xff]
    %v60 = vld [vmem:[%s1 + $0xf0] sm:$0xff]
    %v61 = vld [vmem:[%s1 + $0xf8] sm:$0xff]
    %v62 = vld [vmem:[%s1 + $0x100] sm:$0xff]
    %v63 = vld [vmem:[%s1 + $0x108] sm:$0xff]
    %v64 = vld [vmem:[%s1 + $0x110] sm:$0xff]
    %v65 = vld [vmem:[%s1 + $0x118] sm:$0xff]
    %v66 = vld [vmem:[%s1 + $0x120] sm:$0xff]
    %v67 = vld [vmem:[%s1 + $0x128] sm:$0xff]
    %v68 = vld [vmem:[%s1 + $0x130] sm:$0xff]
    %v69 = vld [vmem:[%s1 + $0x138] sm:$0xff]
    %v70 = vld [vmem:[%s1 + $0x140] sm:$0xff]
    %v71 = vld [vmem:[%s1 + $0x148] sm:$0xff]
    %v72 = vld [vmem:[%s1 + $0x150] sm:$0xff]
    %v73 = vld [vmem:[%s1 + $0x158] sm:$0xff]
    %v74 = vld [vmem:[%s1 + $0x160] sm:$0xff]
    %v75 = vld [vmem:[%s1 + $0x168] sm:$0xff]
    %v76 = vld [vmem:[%s1 + $0x170] sm:$0xff]
    %v77 = vld [vmem:[%s1 + $0x178] sm:$0xff]
    %78 = vmatprep.subr.mxu0 0.0
    %79 = vmatpush1.msra.mxu0 %v30
    %80 = vmatprep.subr.mxu0 0.0
    %81 = vmatpush1.msra.mxu0 %v31
    %82 = vmatprep.subr.mxu0 0.0
    %83 = vmatpush1.msra.mxu0 %v32
    %84 = vmatprep.subr.mxu0 0.0
    %85 = vmatpush1.msra.mxu0 %v33
    %86 = vmatprep.subr.mxu0 0.0
    %87 = vmatpush1.msra.mxu0 %v34
    %88 = vmatprep.subr.mxu0 0.0
    %89 = vmatpush1.msra.mxu0 %v35
    %90 = vmatprep.subr.mxu0 0.0
    %91 = vmatpush1.msra.mxu0 %v36
    %92 = vmatprep.subr.mxu0 0.0
    %93 = vmatpush1.msra.mxu0 %v37
    %94 = vmatprep.subr.mxu0 0.0
    %95 = vmatpush1.msra.mxu0 %v38
    %96 = vmatprep.subr.mxu0 0.0
    %97 = vmatpush1.msra.mxu0 %v39
    %98 = vmatprep.subr.mxu0 0.0
    %99 = vmatpush1.msra.mxu0 %v40
    %100 = vmatprep.subr.mxu0 0.0
    %101 = vmatpush1.msra.mxu0 %v41
    %102 = vmatprep.subr.mxu0 0.0
    %103 = vmatpush1.msra.mxu0 %v42
    %104 = vmatprep.subr.mxu0 0.0
    %105 = vmatpush1.msra.mxu0 %v43
    %106 = vmatprep.subr.mxu0 0.0
    %107 = vmatpush1.msra.mxu0 %v44
    %108 = vmatprep.subr.mxu0 0.0
    %109 = vmatpush1.msra.mxu0 %v45
    %110 = vmatprep.subr.mxu0 0.0
    %111 = vmatpush1.msra.mxu0 %v46
    %112 = vmatprep.subr.mxu0 0.0
    %113 = vmatpush1.msra.mxu0 %v47
    %114 = vmatprep.subr.mxu0 0.0
    %115 = vmatpush1.msra.mxu0 %v48
    %116 = vmatprep.subr.mxu0 0.0
    %117 = vmatpush1.msra.mxu0 %v49
    %118 = vmatprep.subr.mxu0 0.0
    %119 = vmatpush1.msra.mxu0 %v50
    %120 = vmatprep.subr.mxu0 0.0
    %121 = vmatpush1.msra.mxu0 %v51
    %122 = vmatprep.subr.mxu0 0.0
    %123 = vmatpush1.msra.mxu0 %v52
    %124 = vmatprep.subr.mxu0 0.0
    %125 = vmatpush1.msra.mxu0 %v53
    %126 = vmatprep.subr.mxu0 0.0
    %127 = vmatpush1.msra.mxu0 %v54
    %128 = vmatprep.subr.mxu0 0.0
    %129 = vmatpush1.msra.mxu0 %v55
    %130 = vmatprep.subr.mxu0 0.0
    %131 = vmatpush1.msra.mxu0 %v56
    %132 = vmatprep.subr.mxu0 0.0
    %133 = vmatpush1.msra.mxu0 %v57
    %134 = vmatprep.subr.mxu0 0.0
    %135 = vmatpush1.msra.mxu0 %v58
    %136 = vmatprep.subr.mxu0 0.0
    %137 = vmatpush1.msra.mxu0 %v59
    %138 = vmatprep.subr.mxu0 0.0
    %139 = vmatpush1.msra.mxu0 %v60
    %140 = vmatprep.subr.mxu0 0.0
    %141 = vmatpush1.msra.mxu0 %v61
    %142 = vmatprep.mubr.f32.mxu0 %v19
    %143 = vmatmul.mubr.f32.gmra.mrb[0].mxu0 %v18
    %v144 = vpop.f32.mrb[0].mxu0
    %v145 = vadd.f32 0.0, %v144
    %v146 = vpop.f32.mrb[0].mxu0
    %147 = vmatprep.mubr.f32.mxu0 %v22
    %148 = vmatmul.mubr.f32.gmra.mrb[0].mxu0 %v21
    %v149 = vpop.f32.mrb[0].mxu0
    %v150 = vadd.f32 0.0, %v149
    %v151 = vpop.f32.mrb[0].mxu0
    %152 = vmatprep.mubr.f32.mxu0 %v25
    %153 = vmatmul.mubr.f32.gmra.mrb[0].mxu0 %v24
    %v154 = vpop.f32.mrb[0].mxu0
    %v155 = vadd.f32 0.0, %v154
    %v156 = vpop.f32.mrb[0].mxu0
    %157 = vmatprep.mubr.f32.mxu0 %v28
    %158 = vmatmul.mubr.f32.gmra.mrb[0].mxu0 %v27
    %v159 = vpop.f32.mrb[0].mxu0
    %v160 = vadd.f32 0.0, %v159
    %v161 = vpop.f32.mrb[0].mxu0
    %162 = vdwg.mxu0
    %163 = vmatprep.subr.mxu0 0.0
    %164 = vmatpush1.msra.mxu0 %v62
    %165 = vmatprep.subr.mxu0 0.0
    %166 = vmatpush1.msra.mxu0 %v63
    %167 = vmatprep.subr.mxu0 0.0
    %168 = vmatpush1.msra.mxu0 %v64
    %169 = vmatprep.subr.mxu0 0.0
    %170 = vmatpush1.msra.mxu0 %v65
    %171 = vmatprep.subr.mxu0 0.0
    %172 = vmatpush1.msra.mxu0 %v66
    %173 = vmatprep.subr.mxu0 0.0
    %174 = vmatpush1.msra.mxu0 %v67
    %175 = vmatprep.subr.mxu0 0.0
    %176 = vmatpush1.msra.mxu0 %v68
    %177 = vmatprep.subr.mxu0 0.0
    %178 = vmatpush1.msra.mxu0 %v69
    %179 = vmatprep.subr.mxu0 0.0
    %180 = vmatpush1.msra.mxu0 %v70
    %181 = vmatprep.subr.mxu0 0.0
    %182 = vmatpush1.msra.mxu0 %v71
    %183 = vmatprep.subr.mxu0 0.0
    %184 = vmatpush1.msra.mxu0 %v72
    %185 = vmatprep.subr.mxu0 0.0
    %186 = vmatpush1.msra.mxu0 %v73
    %187 = vmatprep.subr.mxu0 0.0
    %188 = vmatpush1.msra.mxu0 %v74
    %189 = vmatprep.subr.mxu0 0.0
    %190 = vmatpush1.msra.mxu0 %v75
    %191 = vmatprep.subr.mxu0 0.0
    %192 = vmatpush1.msra.mxu0 %v76
    %193 = vmatprep.subr.mxu0 0.0
    %194 = vmatpush1.msra.mxu0 %v77
    %195 = vmatprep.subr.mxu0 0.0
    %196 = vmatpush1.msra.mxu0 0.0
    %197 = vmatprep.subr.mxu0 0.0
    %198 = vmatpush1.msra.mxu0 0.0
    %199 = vmatprep.subr.mxu0 0.0
    %200 = vmatpush1.msra.mxu0 0.0
    %201 = vmatprep.subr.mxu0 0.0
    %202 = vmatpush1.msra.mxu0 0.0
    %203 = vmatprep.subr.mxu0 0.0
    %204 = vmatpush1.msra.mxu0 0.0
    %205 = vmatprep.subr.mxu0 0.0
    %206 = vmatpush1.msra.mxu0 0.0
    %207 = vmatprep.subr.mxu0 0.0
    %208 = vmatpush1.msra.mxu0 0.0
    %209 = vmatprep.subr.mxu0 0.0
    %210 = vmatpush1.msra.mxu0 0.0
    %211 = vmatprep.subr.mxu0 0.0
    %212 = vmatpush1.msra.mxu0 0.0
    %213 = vmatprep.subr.mxu0 0.0
    %214 = vmatpush1.msra.mxu0 0.0
    %215 = vmatprep.subr.mxu0 0.0
    %216 = vmatpush1.msra.mxu0 0.0
    %217 = vmatprep.subr.mxu0 0.0
    %218 = vmatpush1.msra.mxu0 0.0
    %219 = vmatprep.subr.mxu0 0.0
    %220 = vmatpush1.msra.mxu0 0.0
    %221 = vmatprep.subr.mxu0 0.0
    %222 = vmatpush1.msra.mxu0 0.0
    %223 = vmatprep.subr.mxu0 0.0
    %224 = vmatpush1.msra.mxu0 0.0
    %225 = vmatprep.subr.mxu0 0.0
    %226 = vmatpush1.msra.mxu0 0.0
    %227 = vmatprep.mubr.f32.mxu0 0.0
    %228 = vmatmul.mubr.f32.gmra.mrb[0].mxu0 %v20
    %v229 = vpop.f32.mrb[0].mxu0
    %v230 = vadd.f32 %v145, %v229
    %v231 = vpop.f32.mrb[0].mxu0
    %232 = vmatprep.mubr.f32.mxu0 0.0
    %233 = vmatmul.mubr.f32.gmra.mrb[0].mxu0 %v23
    %v234 = vpop.f32.mrb[0].mxu0
    %v235 = vadd.f32 %v150, %v234
    %v236 = vpop.f32.mrb[0].mxu0
    %237 = vmatprep.mubr.f32.mxu0 0.0
    %238 = vmatmul.mubr.f32.gmra.mrb[0].mxu0 %v26
    %v239 = vpop.f32.mrb[0].mxu0
    %v240 = vadd.f32 %v155, %v239
    %v241 = vpop.f32.mrb[0].mxu0
    %242 = vmatprep.mubr.f32.mxu0 0.0
    %243 = vmatmul.mubr.f32.gmra.mrb[0].mxu0 %v29
    %v244 = vpop.f32.mrb[0].mxu0
    %v245 = vadd.f32 %v160, %v244
    %v246 = vpop.f32.mrb[0].mxu0
    %247 = vdwg.mxu0
    %v248 = vmax.f32 %v230, 0.0
    %v249 = vmax.f32 %v235, 0.0
    %v250 = vmax.f32 %v240, 0.0
    %v251 = vmax.f32 %v245, 0.0
    %v252 = vmax.f32 %v248, %v249
    %v253 = vrot.slane %v252, 4
    %v254 = vmax.f32 %v252, %v253
    %v255 = vrot.slane %v254, 2
    %v256 = vmax.f32 %v254, %v255
    %v257 = vrot.slane %v256, 1
    %v258 = vmax.f32 %v256, %v257
    %v259 = vmax.f32 %v250, %v251
    %v260 = vrot.slane %v259, 4
    %v261 = vmax.f32 %v259, %v260
    %v262 = vrot.slane %v261, 2
    %v263 = vmax.f32 %v261, %v262
    %v264 = vrot.slane %v263, 1
    %v265 = vmax.f32 %v263, %v264
    %v266 = vmul.f32 %v258, 2.0
    %v267 = vmul.f32 %v265, 2.0
    %v268 = vld [vmem:[%s3] sm:$0x1]
    %v269 = vld [vmem:[%s2] sm:$0xff]
    %v270 = vld [vmem:[%s2 + $0x8] sm:$0xff]
    %v271 = vld [vmem:[%s2 + $0x10] sm:$0xff]
    %v272 = vld [vmem:[%s2 + $0x18] sm:$0xff]
    %v273 = vld [vmem:[%s2 + $0x20] sm:$0xff]
    %v274 = vld [vmem:[%s2 + $0x28] sm:$0xff]
    %v275 = vld [vmem:[%s2 + $0x30] sm:$0xff]
    %v276 = vld [vmem:[%s2 + $0x38] sm:$0xff]
    %v277 = vld [vmem:[%s2 + $0x40] sm:$0xff]
    %v278 = vld [vmem:[%s2 + $0x48] sm:$0xff]
    %v279 = vld [vmem:[%s2 + $0x50] sm:$0xff]
    %v280 = vld [vmem:[%s2 + $0x58] sm:$0xff]
    %v281 = vld [vmem:[%s2 + $0x60] sm:$0xff]
    %v282 = vld [vmem:[%s2 + $0x68] sm:$0xff]
    %v283 = vld [vmem:[%s2 + $0x70] sm:$0xff]
    %v284 = vld [vmem:[%s2 + $0x78] sm:$0xff]
    %vm287 = vcmask 1041409
    %v288 = vsel %vm287, %v267, %v266
    %290 = vmatprep.subr.mxu0 0.0
    %291 = vmatpush1.msra.mxu0 %v269
    %292 = vmatprep.subr.mxu0 0.0
    %293 = vmatpush1.msra.mxu0 %v270
    %294 = vmatprep.subr.mxu0 0.0
    %295 = vmatpush1.msra.mxu0 %v271
    %296 = vmatprep.subr.mxu0 0.0
    %297 = vmatpush1.msra.mxu0 %v272
    %298 = vmatprep.subr.mxu0 0.0
    %299 = vmatpush1.msra.mxu0 %v273
    %300 = vmatprep.subr.mxu0 0.0
    %301 = vmatpush1.msra.mxu0 %v274
    %302 = vmatprep.subr.mxu0 0.0
    %303 = vmatpush1.msra.mxu0 %v275
    %304 = vmatprep.subr.mxu0 0.0
    %305 = vmatpush1.msra.mxu0 %v276
    %306 = vmatprep.subr.mxu0 0.0
    %307 = vmatpush1.msra.mxu0 %v277
    %308 = vmatprep.subr.mxu0 0.0
    %309 = vmatpush1.msra.mxu0 %v278
    %310 = vmatprep.subr.mxu0 0.0
    %311 = vmatpush1.msra.mxu0 %v279
    %312 = vmatprep.subr.mxu0 0.0
    %313 = vmatpush1.msra.mxu0 %v280
    %314 = vmatprep.subr.mxu0 0.0
    %315 = vmatpush1.msra.mxu0 %v281
    %316 = vmatprep.subr.mxu0 0.0
    %317 = vmatpush1.msra.mxu0 %v282
    %318 = vmatprep.subr.mxu0 0.0
    %319 = vmatpush1.msra.mxu0 %v283
    %320 = vmatprep.subr.mxu0 0.0
    %321 = vmatpush1.msra.mxu0 %v284
    %322 = vmatprep.subr.mxu0 0.0
    %323 = vmatpush1.msra.mxu0 0.0
    %324 = vmatprep.subr.mxu0 0.0
    %325 = vmatpush1.msra.mxu0 0.0
    %326 = vmatprep.subr.mxu0 0.0
    %327 = vmatpush1.msra.mxu0 0.0
    %328 = vmatprep.subr.mxu0 0.0
    %329 = vmatpush1.msra.mxu0 0.0
    %330 = vmatprep.subr.mxu0 0.0
    %331 = vmatpush1.msra.mxu0 0.0
    %332 = vmatprep.subr.mxu0 0.0
    %333 = vmatpush1.msra.mxu0 0.0
    %334 = vmatprep.subr.mxu0 0.0
    %335 = vmatpush1.msra.mxu0 0.0
    %336 = vmatprep.subr.mxu0 0.0
    %337 = vmatpush1.msra.mxu0 0.0
    %338 = vmatprep.subr.mxu0 0.0
    %339 = vmatpush1.msra.mxu0 0.0
    %340 = vmatprep.subr.mxu0 0.0
    %341 = vmatpush1.msra.mxu0 0.0
    %342 = vmatprep.subr.mxu0 0.0
    %343 = vmatpush1.msra.mxu0 0.0
    %344 = vmatprep.subr.mxu0 0.0
    %345 = vmatpush1.msra.mxu0 0.0
    %346 = vmatprep.subr.mxu0 0.0
    %347 = vmatpush1.msra.mxu0 0.0
    %348 = vmatprep.subr.mxu0 0.0
    %349 = vmatpush1.msra.mxu0 0.0
    %350 = vmatprep.subr.mxu0 0.0
    %351 = vmatpush1.msra.mxu0 0.0
    %352 = vmatprep.subr.mxu0 0.0
    %353 = vmatpush1.msra.mxu0 0.0
    %354 = vmatprep.mubr.f32.mxu0 0.0
    %355 = vmatmul.mubr.f32.gmra.mrb[0].mxu0 %v288
    %v356 = vpop.f32.mrb[0].mxu0
    %v357 = vadd.f32 0.0, %v356
    %v358 = vpop.f32.mrb[0].mxu0
    %359 = vdwg.mxu0
    %v361 = vlaneseq
    %v362 = vshrl.u32 %v361, 7
    %v363 = vsub.s32 0, %v362
    %v364 = vrot.slane %v268, %v363
    %v366 = vadd.f32 %v364, %v357
    %367 = vst [vmem:[#allocation2] sm:$0x3] %v366
    // Predicated region
    $region18: #{forward.1} parent=1 // pred_check
      _
    $region19: #{forward.1} parent=1 // pred_check_branch
      %369 = sbr.rel (0) target = $region21
    $region20: #{forward.1} parent=1 // pred_region
      %s371 = ssub.s32 32, 32
      %372 = vsyncadd [#allocation3], %s371
      %s374 = sshll.u32 [#allocation2], 4
      %s375 = int_to_ptr.vmem [resolvable:$true] %s374
      %377 = dma.vmem_to_hbm [thread:$0]  %s375, 32, %s4, [#allocation3]
    $region21: #{forward.1} parent=1 // pred_fallthru
      _
    // Predicated region
    $region22: #{forward.1} parent=1 // pred_check
      _
    $region23: #{forward.1} parent=1 // pred_check_branch
      %379 = sbr.rel (0) target = $region25
    $region24: #{forward.1} parent=1 // pred_region
      %380 = dma.done [#allocation3], 32
    $region25: #{forward.1} parent=1 // pred_fallthru
      _
    %381 = vsyncpa [#allocation3], 1

</llo_original>
